<compile_context>
chip_gen: v7x
topology: tpu7x:2x2x1
jax: 0.10.0
libtpu: 0.0.40
codegen_flags: <defaults>
</compile_context>

<pallas_src>
import functools

import jax
import jax.numpy as jnp
from jax.experimental import pallas as pl
from jax.experimental.pallas import tpu as pltpu

_LANE = 128  # lane width: internal feature dims are padded to a multiple of this


def _round_up(n, m):
    return ((n + m - 1) // m) * m


def _fused_mlp_kernel(*refs, num_layers):
    """refs = (x_ref, w0_ref, b0_ref, w1_ref, b1_ref, ..., o_ref).

    Computes h = relu(h @ W_i + b_i) for all hidden layers and
    out = h @ W_last + b_last, entirely in VMEM (single gridless invocation).
    """
    x_ref = refs[0]
    o_ref = refs[-1]
    wb = refs[1:-1]

    h = x_ref[...]
    for i in range(num_layers):
        w = wb[2 * i][...]
        b = wb[2 * i + 1][...]          # (1, out) -> broadcasts over batch rows
        h = jnp.dot(h, w, preferred_element_type=jnp.float32) + b
        if i < num_layers - 1:          # hidden layers get ReLU; last layer does not
            h = jnp.maximum(h, 0.0)
    o_ref[...] = h.astype(o_ref.dtype)


def prepare_mlp_params(params):
    """One-time (setup-path) padding of the internal hidden feature dims.

    - Layer 0 keeps its true input-row count so x is passed unpadded.
    - The last layer keeps its true output-column count so the kernel writes the
      true (B, output_size) result directly (in-kernel masked store).
    - Intermediate hidden dims are zero-padded to x128 so the inner matmuls and
      the resident activation stay lane-dense. Zero-padded bias columns keep the
      padded lanes exactly 0 through ReLU, so semantics are unchanged.

    Returns (flat_padded_params, output_size).
    """
    num_layers = len(params)
    flat = []
    in_dim = params[0][0].shape[0]
    for i, (w, b) in enumerate(params):
        in_true, out_true = w.shape
        out_p = out_true if i == num_layers - 1 else _round_up(out_true, _LANE)
        w_p = jnp.pad(w, ((0, in_dim - in_true), (0, out_p - out_true)))
        b_p = jnp.pad(b.reshape(1, out_true), ((0, 0), (0, out_p - out_true)))
        flat.append(w_p)
        flat.append(b_p)
        in_dim = out_p
    return flat, params[-1][0].shape[1]


def mlp_forward(flat_padded_params, output_size, x):
    """Fused MLP forward.

    flat_padded_params: [W0, b0, W1, b1, ...] as returned by prepare_mlp_params.
    x: (B, input_size) unpadded.
    Returns: (B, output_size) unpadded.
    """
    B = x.shape[0]
    num_layers = len(flat_padded_params) // 2
    flat_inputs = [x] + list(flat_padded_params)

    # Advisory cost estimate (counts the padded problem; harmless).
    flops = 0
    bytes_accessed = x.size * 4
    for i in range(num_layers):
        w = flat_padded_params[2 * i]
        b = flat_padded_params[2 * i + 1]
        flops += 2 * B * w.shape[0] * w.shape[1]
        bytes_accessed += (w.size + b.size) * 4
    bytes_accessed += B * output_size * 4

    vmem = pltpu.MemorySpace.VMEM
    kernel = functools.partial(_fused_mlp_kernel, num_layers=num_layers)
    return pl.pallas_call(
        kernel,
        out_shape=jax.ShapeDtypeStruct((B, output_size), x.dtype),
        in_specs=[pl.BlockSpec(memory_space=vmem) for _ in flat_inputs],
        out_specs=pl.BlockSpec(memory_space=vmem),
        cost_estimate=pl.CostEstimate(
            flops=flops, transcendentals=0, bytes_accessed=bytes_accessed),
    )(*flat_inputs)


def init_mlp_params(key, input_size, hidden_sizes, output_size):
    """Deterministic init mimicking torch.nn.Linear default (uniform +/- 1/sqrt(fan_in)).

    Weights are stored as [in_features, out_features] so the kernel computes
    y = x @ W + b (equivalent to PyTorch's x @ W.T with W [out, in]).
    """
    params = []
    in_size = input_size
    sizes = list(hidden_sizes) + [output_size]
    for out_size in sizes:
        key, kw, kb = jax.random.split(key, 3)
        bound = 1.0 / jnp.sqrt(jnp.float32(in_size))
        w = jax.random.uniform(kw, (in_size, out_size), jnp.float32, -bound, bound)
        b = jax.random.uniform(kb, (out_size,), jnp.float32, -bound, bound)
        params.append((w, b))
        in_size = out_size
    return params


if __name__ == "__main__":
    # Small shapes consistent with the module:
    # Mlp(input_size=32, hidden_sizes=[64, 48], output_size=25), batch=8.
    input_size = 32
    hidden_sizes = [64, 48]
    output_size = 25
    batch = 8

    key = jax.random.PRNGKey(0)
    k_params, k_x = jax.random.split(key)
    params = init_mlp_params(k_params, input_size, hidden_sizes, output_size)
    x = jax.random.normal(k_x, (batch, input_size), jnp.float32)

    # One-time setup-path padding (NOT on the per-call path).
    flat_padded_params, out_size = prepare_mlp_params(params)

    out = mlp_forward(flat_padded_params, out_size, x)
    out = jax.block_until_ready(out)

    # Reference check in plain JAX (same math) to verify kernel semantics.
    ref = x
    for (w, b) in params[:-1]:
        ref = jnp.maximum(ref @ w + b, 0.0)
    ref = ref @ params[-1][0] + params[-1][1]

    assert out.shape == (batch, output_size)
    assert jnp.allclose(out, ref, atol=1e-5, rtol=1e-5)

    print("KERNEL_OK")
</pallas_src>

<mosaic_0001>
module attributes {stable_mosaic.version = 11 : i64} {
  func.func @_fused_mlp_kernel(%arg0: memref<8x32xf32, #tpu.memory_space<vmem>>, %arg1: memref<32x128xf32, #tpu.memory_space<vmem>>, %arg2: memref<1x128xf32, #tpu.memory_space<vmem>>, %arg3: memref<128x128xf32, #tpu.memory_space<vmem>>, %arg4: memref<1x128xf32, #tpu.memory_space<vmem>>, %arg5: memref<128x25xf32, #tpu.memory_space<vmem>>, %arg6: memref<1x25xf32, #tpu.memory_space<vmem>>, %arg7: memref<8x25xf32, #tpu.memory_space<vmem>>) attributes {dimension_semantics = [], scalar_prefetch = 0 : i64, scratch_operands = 0 : i64, tpu.core_type = #tpu.core_type<tc>} {
    %c0 = arith.constant 0 : index
    %c0_0 = arith.constant 0 : index
    %0 = vector.load %arg0[%c0, %c0_0] : memref<8x32xf32, #tpu.memory_space<vmem>>, vector<8x32xf32>
    %c0_1 = arith.constant 0 : index
    %c0_2 = arith.constant 0 : index
    %1 = vector.load %arg1[%c0_1, %c0_2] : memref<32x128xf32, #tpu.memory_space<vmem>>, vector<32x128xf32>
    %c0_3 = arith.constant 0 : index
    %c0_4 = arith.constant 0 : index
    %2 = vector.load %arg2[%c0_3, %c0_4] : memref<1x128xf32, #tpu.memory_space<vmem>>, vector<1x128xf32>
    %cst = arith.constant dense<0.000000e+00> : vector<8x128xf32>
    %3 = tpu.matmul %0, %1, %cst {dimension_numbers = #tpu.dot_dimension_numbers<[1], [0], [0], [1], [0, 0, 1, 1], [], []>} : vector<8x32xf32>, vector<32x128xf32>, vector<8x128xf32> -> vector<8x128xf32>
    %4 = vector.broadcast %2 : vector<1x128xf32> to vector<8x128xf32>
    %5 = arith.addf %3, %4 : vector<8x128xf32>
    %cst_5 = arith.constant 0.000000e+00 : f32
    %6 = vector.broadcast %cst_5 : f32 to vector<8x128xf32>
    %7 = arith.maximumf %5, %6 : vector<8x128xf32>
    %c0_6 = arith.constant 0 : index
    %c0_7 = arith.constant 0 : index
    %8 = vector.load %arg3[%c0_6, %c0_7] : memref<128x128xf32, #tpu.memory_space<vmem>>, vector<128x128xf32>
    %c0_8 = arith.constant 0 : index
    %c0_9 = arith.constant 0 : index
    %9 = vector.load %arg4[%c0_8, %c0_9] : memref<1x128xf32, #tpu.memory_space<vmem>>, vector<1x128xf32>
    %cst_10 = arith.constant dense<0.000000e+00> : vector<8x128xf32>
    %10 = tpu.matmul %7, %8, %cst_10 {dimension_numbers = #tpu.dot_dimension_numbers<[1], [0], [0], [1], [0, 0, 1, 1], [], []>} : vector<8x128xf32>, vector<128x128xf32>, vector<8x128xf32> -> vector<8x128xf32>
    %11 = vector.broadcast %9 : vector<1x128xf32> to vector<8x128xf32>
    %12 = arith.addf %10, %11 : vector<8x128xf32>
    %cst_11 = arith.constant 0.000000e+00 : f32
    %13 = vector.broadcast %cst_11 : f32 to vector<8x128xf32>
    %14 = arith.maximumf %12, %13 : vector<8x128xf32>
    %c0_12 = arith.constant 0 : index
    %c0_13 = arith.constant 0 : index
    %15 = vector.load %arg5[%c0_12, %c0_13] : memref<128x25xf32, #tpu.memory_space<vmem>>, vector<128x25xf32>
    %c0_14 = arith.constant 0 : index
    %c0_15 = arith.constant 0 : index
    %16 = vector.load %arg6[%c0_14, %c0_15] : memref<1x25xf32, #tpu.memory_space<vmem>>, vector<1x25xf32>
    %cst_16 = arith.constant dense<0.000000e+00> : vector<8x25xf32>
    %17 = tpu.matmul %14, %15, %cst_16 {dimension_numbers = #tpu.dot_dimension_numbers<[1], [0], [0], [1], [0, 0, 1, 1], [], []>} : vector<8x128xf32>, vector<128x25xf32>, vector<8x25xf32> -> vector<8x25xf32>
    %18 = vector.broadcast %16 : vector<1x25xf32> to vector<8x25xf32>
    %19 = arith.addf %17, %18 : vector<8x25xf32>
    %c0_17 = arith.constant 0 : index
    %c0_18 = arith.constant 0 : index
    %20 = vector.load %arg7[%c0_17, %c0_18] : memref<8x25xf32, #tpu.memory_space<vmem>>, vector<8x25xf32>
    tpu.vector_store %arg7[%c0_17, %c0_18], %19 {strides = array<i32>} : memref<8x25xf32, #tpu.memory_space<vmem>>, vector<8x25xf32>,
    return
  }
}

</mosaic_0001>

<llo_original>
// kernel: tpu_custom_call.1
$region0: #{tpu_custom_call.1}
  #allocation0 [shape = 'u32[]', space=smem, size = 0x4, offset = 0x4, fixed_abs, tag = 'smem constant byte address 0x4 - core index']
  #allocation1 [shape = 'u32[144,128]{1,0:T(1,128)}', space=vmem, size = 0x12000, scoped, tag = 'internal scratch']
  %s0 = inlined_call_operand.vmem [shape: f32[8,32], index: 0, kind: input, shape index: {}]
  %s1 = inlined_call_operand.vmem [shape: f32[32,128], index: 1, kind: input, shape index: {}]
  %s2 = inlined_call_operand.vmem [shape: f32[1,128], index: 2, kind: input, shape index: {}]
  %s3 = inlined_call_operand.vmem [shape: f32[128,128], index: 3, kind: input, shape index: {}]
  %s4 = inlined_call_operand.vmem [shape: f32[1,128], index: 4, kind: input, shape index: {}]
  %s5 = inlined_call_operand.vmem [shape: f32[128,25], index: 5, kind: input, shape index: {}]
  %s6 = inlined_call_operand.vmem [shape: f32[1,25], index: 6, kind: input, shape index: {}]
  %s7 = inlined_call_operand.hbm [shape: f32[8,25], index: 7, kind: output, shape index: {}]
  %s8 = sld [smem:[#allocation0]]
  $region38: #{tpu_custom_call.1} parent=0
    _
  %s10 = ssub.s32 1, %s8
  %s11 = scalar_select 0, %s10, %s8
  $region1: #{tpu_custom_call.1} parent=0
    #allocation2 [shape = 'u8[4096]{0}', space=vmem, size = 0x1000, scoped, tag = 'output window, operand 0, single buffered']
    #allocation3 [shape = 's32[1]{0}', space=sflag, size = 0x4, scoped, tag = 'scoped memory for tpu_custom_call.1']
    %12 = vsyncpa [#allocation3], 0
    // Predicated region
    $region2: #{tpu_custom_call.1} parent=1 // pred_check
      _
    $region3: #{tpu_custom_call.1} parent=1 // pred_check_branch
      %14 = sbr.rel (0) target = $region5
    $region4: #{tpu_custom_call.1} parent=1 // pred_region
      _
    $region5: #{tpu_custom_call.1} parent=1 // pred_fallthru
      _
    // Predicated region
    $region6: #{tpu_custom_call.1} parent=1 // pred_check
      _
    $region7: #{tpu_custom_call.1} parent=1 // pred_check_branch
      %16 = sbr.rel (0) target = $region9
    $region8: #{tpu_custom_call.1} parent=1 // pred_region
      _
    $region9: #{tpu_custom_call.1} parent=1 // pred_fallthru
      _
    // Predicated region
    $region10: #{tpu_custom_call.1} parent=1 // pred_check
      _
    $region11: #{tpu_custom_call.1} parent=1 // pred_check_branch
      %18 = sbr.rel (0) target = $region13
    $region12: #{tpu_custom_call.1} parent=1 // pred_region
      _
    $region13: #{tpu_custom_call.1} parent=1 // pred_fallthru
      _
    // Predicated region
    $region14: #{tpu_custom_call.1} parent=1 // pred_check
      _
    $region15: #{tpu_custom_call.1} parent=1 // pred_check_branch
      %20 = sbr.rel (0) target = $region17
    $region16: #{tpu_custom_call.1} parent=1 // pred_region
      _
    $region17: #{tpu_custom_call.1} parent=1 // pred_fallthru
      _
    // Predicated region
    $region18: #{tpu_custom_call.1} parent=1 // pred_check
      _
    $region19: #{tpu_custom_call.1} parent=1 // pred_check_branch
      %22 = sbr.rel (0) target = $region21
    $region20: #{tpu_custom_call.1} parent=1 // pred_region
      _
    $region21: #{tpu_custom_call.1} parent=1 // pred_fallthru
      _
    // Predicated region
    $region22: #{tpu_custom_call.1} parent=1 // pred_check
      _
    $region23: #{tpu_custom_call.1} parent=1 // pred_check_branch
      %24 = sbr.rel (0) target = $region25
    $region24: #{tpu_custom_call.1} parent=1 // pred_region
      _
    $region25: #{tpu_custom_call.1} parent=1 // pred_fallthru
      _
    // Predicated region
    $region26: #{tpu_custom_call.1} parent=1 // pred_check
      _
    $region27: #{tpu_custom_call.1} parent=1 // pred_check_branch
      %26 = sbr.rel (0) target = $region29
    $region28: #{tpu_custom_call.1} parent=1 // pred_region
      _
    $region29: #{tpu_custom_call.1} parent=1 // pred_fallthru
      _
    %v27 = vld [vmem:[%s0] sm:$0xff]
    %v28 = vld [vmem:[%s1] sm:$0xff]
    %v29 = vld [vmem:[%s1 + $0x8] sm:$0xff]
    %v30 = vld [vmem:[%s1 + $0x10] sm:$0xff]
    %v31 = vld [vmem:[%s1 + $0x18] sm:$0xff]
    %v32 = vld [vmem:[%s2] sm:$0x1]
    %v34 = vlaneseq
    %v35 = vshrl.u32 %v34, 7
    %v36 = vsub.s32 0, %v35
    %v37 = vrot.slane %v32, %v36
    %vm39 = vcmask 261120
    %v41 = vsel %vm39, %v27, 0
    %43 = vmatprep.subr.mxu0 0.0
    %44 = vmatpush1.msra.mxu0 %v28
    %45 = vmatprep.subr.mxu0 0.0
    %46 = vmatpush1.msra.mxu0 %v29
    %47 = vmatprep.subr.mxu0 0.0
    %48 = vmatpush1.msra.mxu0 %v30
    %49 = vmatprep.subr.mxu0 0.0
    %50 = vmatpush1.msra.mxu0 %v31
    %51 = vmatprep.subr.mxu0 0.0
    %52 = vmatpush1.msra.mxu0 0.0
    %53 = vmatprep.subr.mxu0 0.0
    %54 = vmatpush1.msra.mxu0 0.0
    %55 = vmatprep.subr.mxu0 0.0
    %56 = vmatpush1.msra.mxu0 0.0
    %57 = vmatprep.subr.mxu0 0.0
    %58 = vmatpush1.msra.mxu0 0.0
    %59 = vmatprep.subr.mxu0 0.0
    %60 = vmatpush1.msra.mxu0 0.0
    %61 = vmatprep.subr.mxu0 0.0
    %62 = vmatpush1.msra.mxu0 0.0
    %63 = vmatprep.subr.mxu0 0.0
    %64 = vmatpush1.msra.mxu0 0.0
    %65 = vmatprep.subr.mxu0 0.0
    %66 = vmatpush1.msra.mxu0 0.0
    %67 = vmatprep.subr.mxu0 0.0
    %68 = vmatpush1.msra.mxu0 0.0
    %69 = vmatprep.subr.mxu0 0.0
    %70 = vmatpush1.msra.mxu0 0.0
    %71 = vmatprep.subr.mxu0 0.0
    %72 = vmatpush1.msra.mxu0 0.0
    %73 = vmatprep.subr.mxu0 0.0
    %74 = vmatpush1.msra.mxu0 0.0
    %75 = vmatprep.subr.mxu0 0.0
    %76 = vmatpush1.msra.mxu0 0.0
    %77 = vmatprep.subr.mxu0 0.0
    %78 = vmatpush1.msra.mxu0 0.0
    %79 = vmatprep.subr.mxu0 0.0
    %80 = vmatpush1.msra.mxu0 0.0
    %81 = vmatprep.subr.mxu0 0.0
    %82 = vmatpush1.msra.mxu0 0.0
    %83 = vmatprep.subr.mxu0 0.0
    %84 = vmatpush1.msra.mxu0 0.0
    %85 = vmatprep.subr.mxu0 0.0
    %86 = vmatpush1.msra.mxu0 0.0
    %87 = vmatprep.subr.mxu0 0.0
    %88 = vmatpush1.msra.mxu0 0.0
    %89 = vmatprep.subr.mxu0 0.0
    %90 = vmatpush1.msra.mxu0 0.0
    %91 = vmatprep.subr.mxu0 0.0
    %92 = vmatpush1.msra.mxu0 0.0
    %93 = vmatprep.subr.mxu0 0.0
    %94 = vmatpush1.msra.mxu0 0.0
    %95 = vmatprep.subr.mxu0 0.0
    %96 = vmatpush1.msra.mxu0 0.0
    %97 = vmatprep.subr.mxu0 0.0
    %98 = vmatpush1.msra.mxu0 0.0
    %99 = vmatprep.subr.mxu0 0.0
    %100 = vmatpush1.msra.mxu0 0.0
    %101 = vmatprep.subr.mxu0 0.0
    %102 = vmatpush1.msra.mxu0 0.0
    %103 = vmatprep.subr.mxu0 0.0
    %104 = vmatpush1.msra.mxu0 0.0
    %105 = vmatprep.subr.mxu0 0.0
    %106 = vmatpush1.msra.mxu0 0.0
    %107 = vmatprep.mubr.f32.mxu0 0.0
    %108 = vmatmul.mubr.f32.gmra.mrb[0].mxu0 %v41
    %v109 = vpop.f32.mrb[0].mxu0
    %v110 = vadd.f32 %v37, %v109
    %v111 = vpop.f32.mrb[0].mxu0
    %112 = vdwg.mxu0
    %v113 = vmax.f32 %v110, 0.0
    %v114 = vld [vmem:[%s3] sm:$0xff]
    %v115 = vld [vmem:[%s3 + $0x8] sm:$0xff]
    %v116 = vld [vmem:[%s3 + $0x10] sm:$0xff]
    %v117 = vld [vmem:[%s3 + $0x18] sm:$0xff]
    %v118 = vld [vmem:[%s3 + $0x20] sm:$0xff]
    %v119 = vld [vmem:[%s3 + $0x28] sm:$0xff]
    %v120 = vld [vmem:[%s3 + $0x30] sm:$0xff]
    %v121 = vld [vmem:[%s3 + $0x38] sm:$0xff]
    %v122 = vld [vmem:[%s3 + $0x40] sm:$0xff]
    %v123 = vld [vmem:[%s3 + $0x48] sm:$0xff]
    %v124 = vld [vmem:[%s3 + $0x50] sm:$0xff]
    %v125 = vld [vmem:[%s3 + $0x58] sm:$0xff]
    %v126 = vld [vmem:[%s3 + $0x60] sm:$0xff]
    %v127 = vld [vmem:[%s3 + $0x68] sm:$0xff]
    %v128 = vld [vmem:[%s3 + $0x70] sm:$0xff]
    %v129 = vld [vmem:[%s3 + $0x78] sm:$0xff]
    %v130 = vld [vmem:[%s4] sm:$0x1]
    %v132 = vlaneseq
    %v133 = vshrl.u32 %v132, 7
    %v134 = vsub.s32 0, %v133
    %v135 = vrot.slane %v130, %v134
    %137 = vmatprep.subr.mxu0 0.0
    %138 = vmatpush1.msra.mxu0 %v114
    %139 = vmatprep.subr.mxu0 0.0
    %140 = vmatpush1.msra.mxu0 %v115
    %141 = vmatprep.subr.mxu0 0.0
    %142 = vmatpush1.msra.mxu0 %v116
    %143 = vmatprep.subr.mxu0 0.0
    %144 = vmatpush1.msra.mxu0 %v117
    %145 = vmatprep.subr.mxu0 0.0
    %146 = vmatpush1.msra.mxu0 %v118
    %147 = vmatprep.subr.mxu0 0.0
    %148 = vmatpush1.msra.mxu0 %v119
    %149 = vmatprep.subr.mxu0 0.0
    %150 = vmatpush1.msra.mxu0 %v120
    %151 = vmatprep.subr.mxu0 0.0
    %152 = vmatpush1.msra.mxu0 %v121
    %153 = vmatprep.subr.mxu0 0.0
    %154 = vmatpush1.msra.mxu0 %v122
    %155 = vmatprep.subr.mxu0 0.0
    %156 = vmatpush1.msra.mxu0 %v123
    %157 = vmatprep.subr.mxu0 0.0
    %158 = vmatpush1.msra.mxu0 %v124
    %159 = vmatprep.subr.mxu0 0.0
    %160 = vmatpush1.msra.mxu0 %v125
    %161 = vmatprep.subr.mxu0 0.0
    %162 = vmatpush1.msra.mxu0 %v126
    %163 = vmatprep.subr.mxu0 0.0
    %164 = vmatpush1.msra.mxu0 %v127
    %165 = vmatprep.subr.mxu0 0.0
    %166 = vmatpush1.msra.mxu0 %v128
    %167 = vmatprep.subr.mxu0 0.0
    %168 = vmatpush1.msra.mxu0 %v129
    %169 = vmatprep.subr.mxu0 0.0
    %170 = vmatpush1.msra.mxu0 0.0
    %171 = vmatprep.subr.mxu0 0.0
    %172 = vmatpush1.msra.mxu0 0.0
    %173 = vmatprep.subr.mxu0 0.0
    %174 = vmatpush1.msra.mxu0 0.0
    %175 = vmatprep.subr.mxu0 0.0
    %176 = vmatpush1.msra.mxu0 0.0
    %177 = vmatprep.subr.mxu0 0.0
    %178 = vmatpush1.msra.mxu0 0.0
    %179 = vmatprep.subr.mxu0 0.0
    %180 = vmatpush1.msra.mxu0 0.0
    %181 = vmatprep.subr.mxu0 0.0
    %182 = vmatpush1.msra.mxu0 0.0
    %183 = vmatprep.subr.mxu0 0.0
    %184 = vmatpush1.msra.mxu0 0.0
    %185 = vmatprep.subr.mxu0 0.0
    %186 = vmatpush1.msra.mxu0 0.0
    %187 = vmatprep.subr.mxu0 0.0
    %188 = vmatpush1.msra.mxu0 0.0
    %189 = vmatprep.subr.mxu0 0.0
    %190 = vmatpush1.msra.mxu0 0.0
    %191 = vmatprep.subr.mxu0 0.0
    %192 = vmatpush1.msra.mxu0 0.0
    %193 = vmatprep.subr.mxu0 0.0
    %194 = vmatpush1.msra.mxu0 0.0
    %195 = vmatprep.subr.mxu0 0.0
    %196 = vmatpush1.msra.mxu0 0.0
    %197 = vmatprep.subr.mxu0 0.0
    %198 = vmatpush1.msra.mxu0 0.0
    %199 = vmatprep.subr.mxu0 0.0
    %200 = vmatpush1.msra.mxu0 0.0
    %201 = vmatprep.mubr.f32.mxu0 0.0
    %202 = vmatmul.mubr.f32.gmra.mrb[0].mxu0 %v113
    %v203 = vpop.f32.mrb[0].mxu0
    %v204 = vadd.f32 %v135, %v203
    %v205 = vpop.f32.mrb[0].mxu0
    %206 = vdwg.mxu0
    %v207 = vmax.f32 %v204, 0.0
    %v208 = vld [vmem:[%s5] sm:$0xff]
    %v209 = vld [vmem:[%s5 + $0x8] sm:$0xff]
    %v210 = vld [vmem:[%s5 + $0x10] sm:$0xff]
    %v211 = vld [vmem:[%s5 + $0x18] sm:$0xff]
    %v212 = vld [vmem:[%s5 + $0x20] sm:$0xff]
    %v213 = vld [vmem:[%s5 + $0x28] sm:$0xff]
    %v214 = vld [vmem:[%s5 + $0x30] sm:$0xff]
    %v215 = vld [vmem:[%s5 + $0x38] sm:$0xff]
    %v216 = vld [vmem:[%s5 + $0x40] sm:$0xff]
    %v217 = vld [vmem:[%s5 + $0x48] sm:$0xff]
    %v218 = vld [vmem:[%s5 + $0x50] sm:$0xff]
    %v219 = vld [vmem:[%s5 + $0x58] sm:$0xff]
    %v220 = vld [vmem:[%s5 + $0x60] sm:$0xff]
    %v221 = vld [vmem:[%s5 + $0x68] sm:$0xff]
    %v222 = vld [vmem:[%s5 + $0x70] sm:$0xff]
    %v223 = vld [vmem:[%s5 + $0x78] sm:$0xff]
    %v224 = vld [vmem:[%s6] sm:$0x1]
    %v226 = vlaneseq
    %v227 = vshrl.u32 %v226, 7
    %v228 = vsub.s32 0, %v227
    %v229 = vrot.slane %v224, %v228
    %231 = vmatprep.subr.mxu0 0.0
    %232 = vmatpush1.msra.mxu0 %v208
    %233 = vmatprep.subr.mxu0 0.0
    %234 = vmatpush1.msra.mxu0 %v209
    %235 = vmatprep.subr.mxu0 0.0
    %236 = vmatpush1.msra.mxu0 %v210
    %237 = vmatprep.subr.mxu0 0.0
    %238 = vmatpush1.msra.mxu0 %v211
    %239 = vmatprep.subr.mxu0 0.0
    %240 = vmatpush1.msra.mxu0 %v212
    %241 = vmatprep.subr.mxu0 0.0
    %242 = vmatpush1.msra.mxu0 %v213
    %243 = vmatprep.subr.mxu0 0.0
    %244 = vmatpush1.msra.mxu0 %v214
    %245 = vmatprep.subr.mxu0 0.0
    %246 = vmatpush1.msra.mxu0 %v215
    %247 = vmatprep.subr.mxu0 0.0
    %248 = vmatpush1.msra.mxu0 %v216
    %249 = vmatprep.subr.mxu0 0.0
    %250 = vmatpush1.msra.mxu0 %v217
    %251 = vmatprep.subr.mxu0 0.0
    %252 = vmatpush1.msra.mxu0 %v218
    %253 = vmatprep.subr.mxu0 0.0
    %254 = vmatpush1.msra.mxu0 %v219
    %255 = vmatprep.subr.mxu0 0.0
    %256 = vmatpush1.msra.mxu0 %v220
    %257 = vmatprep.subr.mxu0 0.0
    %258 = vmatpush1.msra.mxu0 %v221
    %259 = vmatprep.subr.mxu0 0.0
    %260 = vmatpush1.msra.mxu0 %v222
    %261 = vmatprep.subr.mxu0 0.0
    %262 = vmatpush1.msra.mxu0 %v223
    %263 = vmatprep.subr.mxu0 0.0
    %264 = vmatpush1.msra.mxu0 0.0
    %265 = vmatprep.subr.mxu0 0.0
    %266 = vmatpush1.msra.mxu0 0.0
    %267 = vmatprep.subr.mxu0 0.0
    %268 = vmatpush1.msra.mxu0 0.0
    %269 = vmatprep.subr.mxu0 0.0
    %270 = vmatpush1.msra.mxu0 0.0
    %271 = vmatprep.subr.mxu0 0.0
    %272 = vmatpush1.msra.mxu0 0.0
    %273 = vmatprep.subr.mxu0 0.0
    %274 = vmatpush1.msra.mxu0 0.0
    %275 = vmatprep.subr.mxu0 0.0
    %276 = vmatpush1.msra.mxu0 0.0
    %277 = vmatprep.subr.mxu0 0.0
    %278 = vmatpush1.msra.mxu0 0.0
    %279 = vmatprep.subr.mxu0 0.0
    %280 = vmatpush1.msra.mxu0 0.0
    %281 = vmatprep.subr.mxu0 0.0
    %282 = vmatpush1.msra.mxu0 0.0
    %283 = vmatprep.subr.mxu0 0.0
    %284 = vmatpush1.msra.mxu0 0.0
    %285 = vmatprep.subr.mxu0 0.0
    %286 = vmatpush1.msra.mxu0 0.0
    %287 = vmatprep.subr.mxu0 0.0
    %288 = vmatpush1.msra.mxu0 0.0
    %289 = vmatprep.subr.mxu0 0.0
    %290 = vmatpush1.msra.mxu0 0.0
    %291 = vmatprep.subr.mxu0 0.0
    %292 = vmatpush1.msra.mxu0 0.0
    %293 = vmatprep.subr.mxu0 0.0
    %294 = vmatpush1.msra.mxu0 0.0
    %295 = vmatprep.mubr.f32.mxu0 0.0
    %296 = vmatmul.mubr.f32.gmra.mrb[0].mxu0 %v207
    %v297 = vpop.f32.mrb[0].mxu0
    %v298 = vadd.f32 %v229, %v297
    %v299 = vpop.f32.mrb[0].mxu0
    %300 = vdwg.mxu0
    %vm301 = vcmask 203776
    %302 = vst.msk [vmem:[#allocation2] sm:$0xff] %vm301, %v298
    // Predicated region
    $region30: #{tpu_custom_call.1} parent=1 // pred_check
      _
    $region31: #{tpu_custom_call.1} parent=1 // pred_check_branch
      %304 = sbr.rel (0) target = $region33
    $region32: #{tpu_custom_call.1} parent=1 // pred_region
      %s306 = ssub.s32 128, 128
      %307 = vsyncadd [#allocation3], %s306
      %s309 = sshll.u32 [#allocation2], 4
      %s310 = int_to_ptr.vmem [resolvable:$true] %s309
      %312 = dma.vmem_to_hbm [thread:$0]  %s310, 128, %s7, [#allocation3]
    $region33: #{tpu_custom_call.1} parent=1 // pred_fallthru
      _
    // Predicated region
    $region34: #{tpu_custom_call.1} parent=1 // pred_check
      _
    $region35: #{tpu_custom_call.1} parent=1 // pred_check_branch
      %314 = sbr.rel (0) target = $region37
    $region36: #{tpu_custom_call.1} parent=1 // pred_region
      %315 = dma.done [#allocation3], 128
    $region37: #{tpu_custom_call.1} parent=1 // pred_fallthru
      _
    %316 = vsyncpa [#allocation3], 1

</llo_original>
